<compile_context>
chip_gen: v6e
topology: v6e:2x2x1
jax: 0.10.0
libtpu: 0.0.40
codegen_flags: <defaults>
</compile_context>

<pallas_src>
import functools

import jax
import jax.numpy as jnp
from jax.experimental import pallas as pl
from jax.experimental.pallas import tpu as pltpu


# ----------------------------- kernels --------------------------------------


def _attention_tail(q, k, v, out_ref, mxu_dtype):
    """scoringDot + context for one batch tile. q:(TB,H) f32, k,v:(TB,S,H) f32."""
    TB, H = out_ref.shape
    # Scores (TB,1,S): S on the lane axis, batched MXU einsum (flash-style),
    # bf16 operands / f32 accumulation in production.
    s = jnp.einsum("bqh,bkh->bqk",
                   q[:, None, :].astype(mxu_dtype), k.astype(mxu_dtype),
                   preferred_element_type=jnp.float32)           # (TB,1,S)
    m = jnp.max(s, axis=-1, keepdims=True)
    e = jnp.exp(s - m)                                           # unnormalized softmax
    denom = jnp.sum(e, axis=-1, keepdims=True)                   # (TB,1,1)
    # TODO(synk): the optional additive `mask` of the PyTorch forward (added to
    # the softmaxed weights, with prints) is not implemented; mask=None path only.
    ctx = jnp.einsum("bqk,bkh->bqh",
                     e.astype(mxu_dtype), v.astype(mxu_dtype),
                     preferred_element_type=jnp.float32)         # (TB,1,H)
    # Normalize AFTER the context matmul: single (TB,H) VPU multiply + EUP vrcp.
    approx = mxu_dtype != jnp.float32       # exact reciprocal on the f32 debug path
    out_ref[...] = (ctx * pl.reciprocal(denom, approx=approx)).reshape(TB, H)


def ca_kernel_fused(x_ref, h_ref, wq_ref, bq_ref, wkv_ref, bkv_ref, out_ref, *,
                    mxu_dtype):
    """H % 128 == 0: one (TB*S,H)@(H,2H) K|V projection, lane-aligned split."""
    TB, H = out_ref.shape
    S = x_ref.shape[0] // TB
    x = x_ref[...]                                               # (TB*S,H) mxu_dtype
    # MXU matmuls in the input dtype, f32 accumulation; bias+tanh stay f32.
    kv = jnp.tanh(jnp.dot(x, wkv_ref[...],
                          preferred_element_type=jnp.float32) + bkv_ref[...])
    q = jnp.tanh(jnp.dot(h_ref[...], wq_ref[...],
                         preferred_element_type=jnp.float32) + bq_ref[...])
    # NOTE: at very large H on v7x the q projection could be hoisted to the
    # wrapper to drop Wq's VMEM residency; kept in-kernel here (tiny at M=TB).
    k = kv[:, :H].reshape(TB, S, H)                              # lane-tile aligned slice
    v = kv[:, H:].reshape(TB, S, H)
    _attention_tail(q, k, v, out_ref, mxu_dtype)


def ca_kernel_split(x_ref, h_ref, wq_ref, bq_ref, wk_ref, bk_ref, wv_ref, bv_ref,
                    out_ref, *, mxu_dtype):
    """H % 128 != 0: two (TB*S,H)@(H,H) dots sharing x — avoids the unaligned
    kv[:, :H]/kv[:, H:] column split that would force a full XLU relayout copy."""
    TB, H = out_ref.shape
    S = x_ref.shape[0] // TB
    x = x_ref[...]
    k = jnp.tanh(jnp.dot(x, wk_ref[...],
                         preferred_element_type=jnp.float32) + bk_ref[...])
    v = jnp.tanh(jnp.dot(x, wv_ref[...],
                         preferred_element_type=jnp.float32) + bv_ref[...])
    q = jnp.tanh(jnp.dot(h_ref[...], wq_ref[...],
                         preferred_element_type=jnp.float32) + bq_ref[...])
    _attention_tail(q, k.reshape(TB, S, H), v.reshape(TB, S, H), out_ref, mxu_dtype)


# ------------------------- tiling / VMEM planning ---------------------------


def _vmem_plan():
    """Return (per-step VMEM budget, vmem_limit_bytes), chip aware."""
    try:
        cap = int(pltpu.get_tpu_info().vmem_capacity_bytes)
    except Exception:
        cap = 64 * 1024 * 1024                   # assume v7x-class if query unavailable
    if cap <= 64 * 1024 * 1024:                  # v7x: 64 MiB physical per TensorCore
        limit = 48 * 1024 * 1024
    else:                                        # v5e / v6e: 128 MiB physical
        limit = 100 * 1024 * 1024
    return int(limit * 0.85), limit              # headroom for compiler scratch


def _step_vmem_bytes(TB, S, H, x_bytes):
    """Rough per-grid-step VMEM footprint estimate."""
    xb = 2 * TB * S * H * x_bytes                # x block, double-buffered
    hb = 2 * TB * H * x_bytes                    # last_hidden block
    wb = 3 * H * H * x_bytes + 3 * H * 4         # Wq + Wk|Wv (single-buffered) + f32 biases
    ob = 2 * TB * H * 4                          # output block, double-buffered
    kv = TB * S * 2 * H * 4                      # f32 post-tanh K/V intermediates
    kvc = TB * S * 2 * H * x_bytes               # casts fed to the attention einsums
    misc = TB * (S + H) * 4
    return xb + hb + wb + ob + kv + kvc + misc


def _choose_batch_tile(B, S, H, x_bytes, vmem_budget):
    """Batches per grid step (TB). TB divides B and is a multiple of 8 (sublane
    rule on the (TB,H)/(TB*S,H) blocks) unless TB == B (full-dim block).
    Preferences: fits the chip VMEM budget; KV-projection tile >= ~512 rows
    (HBM-roofline sweet spot); >= 4 grid steps so v7x megacore keeps >= 2
    steps per TensorCore (prefetch of step i+1 overlaps compute on each core)."""
    cands = [c for c in range(8, B + 1, 8) if B % c == 0] or [B]
    fit = [c for c in cands if _step_vmem_bytes(c, S, H, x_bytes) <= vmem_budget]
    if not fit:
        fit = [cands[0]]                         # smallest legal tile; may spill
        # TODO(synk): if even the smallest batch tile overflows VMEM (huge S*H),
        # tile over S with a flash-style online-softmax inner grid axis.
    tb = fit[-1]                                 # largest tile that fits
    for c in reversed(fit):                      # largest -> smallest
        if B // c >= 4 and c * S >= 512:
            tb = c                               # >= 2 steps per TC without starving the tile
            break
    return tb


# ------------------------------- wrapper -------------------------------------


def cross_attention(channel_img, last_hidden, params, *, use_bf16=True):
    """channel_img: (B,S,H) f32, last_hidden: (B,H) f32 -> context (B,H) f32.

    use_bf16=True : bf16 MXU operands, f32 accumulation (production path).
    use_bf16=False: all-f32 debug path (tighter numerics vs the reference).
    """
    B, S, H = channel_img.shape
    wq_t, bq, wk_t, bk, wv_t, bv = params
    mxu_dtype = jnp.bfloat16 if use_bf16 else jnp.float32
    x_bytes = 2 if use_bf16 else 4

    budget, vmem_limit = _vmem_plan()
    TB = _choose_batch_tile(B, S, H, x_bytes, budget)
    grid = (B // TB,)

    # Activations / weights enter the kernel in the MXU dtype (halves DMA bytes
    # and VMEM per buffer in bf16 mode; in a real model upstream layers emit
    # bf16 directly). Biases stay f32 so the VPU add + tanh run in f32.
    x_flat = channel_img.reshape(B * S, H).astype(mxu_dtype)
    h = last_hidden.astype(mxu_dtype)

    const = dict(pipeline_mode=pl.Buffered(1))   # constant-index blocks: 1 buffer

    in_specs = [
        pl.BlockSpec((TB * S, H), lambda b: (b, 0)),              # channel_img (flat)
        pl.BlockSpec((TB, H), lambda b: (b, 0)),                  # last_hidden
        pl.BlockSpec((H, H), lambda b: (0, 0), **const),          # Wq^T
        pl.BlockSpec((1, H), lambda b: (0, 0), **const),          # bq
    ]
    args = [x_flat, h, wq_t.astype(mxu_dtype), bq.reshape(1, H).astype(jnp.float32)]

    if H % 128 == 0:
        # Fused K|V weight: single MXU matmul, lane-aligned split inside kernel.
        wkv_t = jnp.concatenate([wk_t, wv_t], axis=1).astype(mxu_dtype)   # (H, 2H)
        bkv = jnp.concatenate([bk, bv]).reshape(1, 2 * H).astype(jnp.float32)
        in_specs += [pl.BlockSpec((H, 2 * H), lambda b: (0, 0), **const),  # [Wk^T|Wv^T]
                     pl.BlockSpec((1, 2 * H), lambda b: (0, 0), **const)]  # [bk|bv]
        args += [wkv_t, bkv]
        kernel = functools.partial(ca_kernel_fused, mxu_dtype=mxu_dtype)
    else:
        in_specs += [pl.BlockSpec((H, H), lambda b: (0, 0), **const),      # Wk^T
                     pl.BlockSpec((1, H), lambda b: (0, 0), **const),      # bk
                     pl.BlockSpec((H, H), lambda b: (0, 0), **const),      # Wv^T
                     pl.BlockSpec((1, H), lambda b: (0, 0), **const)]      # bv
        args += [wk_t.astype(mxu_dtype), bk.reshape(1, H).astype(jnp.float32),
                 wv_t.astype(mxu_dtype), bv.reshape(1, H).astype(jnp.float32)]
        kernel = functools.partial(ca_kernel_split, mxu_dtype=mxu_dtype)

    return pl.pallas_call(
        kernel,
        out_shape=jax.ShapeDtypeStruct((B, H), jnp.float32),
        grid_spec=pltpu.PrefetchScalarGridSpec(
            num_scalar_prefetch=0,
            grid=grid,
            in_specs=in_specs,
            out_specs=pl.BlockSpec((TB, H), lambda b: (b, 0)),
        ),
        compiler_params=pltpu.CompilerParams(
            dimension_semantics=("parallel",),
            vmem_limit_bytes=vmem_limit),
    )(*args)


# --------------------------- reference / init --------------------------------


def init_params(key, hidden_size):
    """Deterministic init mimicking nn.Linear(hidden, hidden) shapes."""
    ks = jax.random.split(key, 6)
    bound = 1.0 / jnp.sqrt(hidden_size)

    def lin(kw, kb):
        W = jax.random.uniform(kw, (hidden_size, hidden_size),
                               minval=-bound, maxval=bound, dtype=jnp.float32)
        b = jax.random.uniform(kb, (hidden_size,),
                               minval=-bound, maxval=bound, dtype=jnp.float32)
        return W, b

    Wq, bq = lin(ks[0], ks[1])
    Wk, bk = lin(ks[2], ks[3])
    Wv, bv = lin(ks[4], ks[5])
    # pass transposed weights so kernels compute x @ W^T via x @ (W.T)
    return (Wq.T, bq, Wk.T, bk, Wv.T, bv)


def reference(channel_img, last_hidden, params):
    wq_t, bq, wk_t, bk, wv_t, bv = params
    q = jnp.tanh(last_hidden @ wq_t + bq)                 # (B,H)
    k = jnp.tanh(channel_img @ wk_t + bk)                 # (B,S,H)
    v = jnp.tanh(channel_img @ wv_t + bv)                 # (B,S,H)
    scores = jnp.einsum("bsh,bh->bs", k, q)               # (B,S)
    w = jax.nn.softmax(scores, axis=1)                    # (B,S)
    return jnp.einsum("bs,bsh->bh", w, v)                 # (B,H)


# --------------------------------- main ---------------------------------------


if __name__ == "__main__":
    def run_case(B, S, H, seed, use_bf16, tol):
        key = jax.random.PRNGKey(seed)
        k1, k2, k3 = jax.random.split(key, 3)
        channel_img = jax.random.normal(k1, (B, S, H), dtype=jnp.float32)
        last_hidden = jax.random.normal(k2, (B, H), dtype=jnp.float32)
        params = init_params(k3, H)
        out = jax.block_until_ready(
            cross_attention(channel_img, last_hidden, params, use_bf16=use_bf16))
        ref = reference(channel_img, last_hidden, params)
        assert out.shape == (B, H)
        assert jnp.allclose(out, ref, atol=tol, rtol=tol), (
            f"mismatch vs reference (B={B}, S={S}, H={H}, bf16={use_bf16})")

    # Small module-consistent shapes (batch=2, seq=8, hidden=32).
    # f32 debug path: tolerance is 2e-2 (not 1e-5) because the XLA reference's
    # own f32 matmuls use TPU default (bf16-pass) precision, which may differ
    # from the in-kernel f32 matmul pass count.
    run_case(B=2, S=8, H=32, seed=0, use_bf16=False, tol=2e-2)
    # bf16 MXU production path: loose tolerance (bf16 mantissa ~ 8 bits).
    run_case(B=2, S=8, H=32, seed=0, use_bf16=True, tol=5e-2)
    # Lane-aligned hidden size exercises the fused K|V projection kernel.
    run_case(B=8, S=8, H=128, seed=1, use_bf16=True, tol=5e-2)

    print("KERNEL_OK")
</pallas_src>

<mosaic_0001>
module attributes {stable_mosaic.version = 11 : i64} {
  func.func @ca_kernel_split(%arg0: i32, %arg1: memref<16x32xf32, #tpu.memory_space<vmem>>, %arg2: memref<2x32xf32, #tpu.memory_space<vmem>>, %arg3: memref<32x32xf32, #tpu.memory_space<vmem>>, %arg4: memref<1x32xf32, #tpu.memory_space<vmem>>, %arg5: memref<32x32xf32, #tpu.memory_space<vmem>>, %arg6: memref<1x32xf32, #tpu.memory_space<vmem>>, %arg7: memref<32x32xf32, #tpu.memory_space<vmem>>, %arg8: memref<1x32xf32, #tpu.memory_space<vmem>>, %arg9: memref<2x32xf32, #tpu.memory_space<vmem>>) attributes {dimension_semantics = [#tpu.dimension_semantics<parallel>], iteration_bounds = array<i64: 1>, scalar_prefetch = 0 : i64, scratch_operands = 0 : i64, tpu.core_type = #tpu.core_type<tc>, window_params = [{transform_indices = @transform_0, window_bounds = array<i64: 16, 32>}, {transform_indices = @transform_1, window_bounds = array<i64: 2, 32>}, {pipeline_mode = #tpu.pipeline_mode<synchronous>, transform_indices = @transform_2, window_bounds = array<i64: 32, 32>}, {pipeline_mode = #tpu.pipeline_mode<synchronous>, transform_indices = @transform_3, window_bounds = array<i64: 1, 32>}, {pipeline_mode = #tpu.pipeline_mode<synchronous>, transform_indices = @transform_4, window_bounds = array<i64: 32, 32>}, {pipeline_mode = #tpu.pipeline_mode<synchronous>, transform_indices = @transform_5, window_bounds = array<i64: 1, 32>}, {pipeline_mode = #tpu.pipeline_mode<synchronous>, transform_indices = @transform_6, window_bounds = array<i64: 32, 32>}, {pipeline_mode = #tpu.pipeline_mode<synchronous>, transform_indices = @transform_7, window_bounds = array<i64: 1, 32>}, {transform_indices = @transform_8, window_bounds = array<i64: 2, 32>}]} {
    %c0 = arith.constant 0 : index
    %c0_0 = arith.constant 0 : index
    %0 = vector.load %arg1[%c0, %c0_0] : memref<16x32xf32, #tpu.memory_space<vmem>>, vector<16x32xf32>
    %c0_1 = arith.constant 0 : index
    %c0_2 = arith.constant 0 : index
    %1 = vector.load %arg5[%c0_1, %c0_2] : memref<32x32xf32, #tpu.memory_space<vmem>>, vector<32x32xf32>
    %cst = arith.constant dense<0.000000e+00> : vector<16x32xf32>
    %2 = tpu.matmul %0, %1, %cst {dimension_numbers = #tpu.dot_dimension_numbers<[1], [0], [0], [1], [0, 0, 1, 1], [], []>} : vector<16x32xf32>, vector<32x32xf32>, vector<16x32xf32> -> vector<16x32xf32>
    %c0_3 = arith.constant 0 : index
    %c0_4 = arith.constant 0 : index
    %3 = vector.load %arg6[%c0_3, %c0_4] : memref<1x32xf32, #tpu.memory_space<vmem>>, vector<1x32xf32>
    %4 = vector.broadcast %3 : vector<1x32xf32> to vector<16x32xf32>
    %5 = arith.addf %2, %4 : vector<16x32xf32>
    %6 = math.tanh %5 : vector<16x32xf32>
    %c0_5 = arith.constant 0 : index
    %c0_6 = arith.constant 0 : index
    %7 = vector.load %arg7[%c0_5, %c0_6] : memref<32x32xf32, #tpu.memory_space<vmem>>, vector<32x32xf32>
    %cst_7 = arith.constant dense<0.000000e+00> : vector<16x32xf32>
    %8 = tpu.matmul %0, %7, %cst_7 {dimension_numbers = #tpu.dot_dimension_numbers<[1], [0], [0], [1], [0, 0, 1, 1], [], []>} : vector<16x32xf32>, vector<32x32xf32>, vector<16x32xf32> -> vector<16x32xf32>
    %c0_8 = arith.constant 0 : index
    %c0_9 = arith.constant 0 : index
    %9 = vector.load %arg8[%c0_8, %c0_9] : memref<1x32xf32, #tpu.memory_space<vmem>>, vector<1x32xf32>
    %10 = vector.broadcast %9 : vector<1x32xf32> to vector<16x32xf32>
    %11 = arith.addf %8, %10 : vector<16x32xf32>
    %12 = math.tanh %11 : vector<16x32xf32>
    %c0_10 = arith.constant 0 : index
    %c0_11 = arith.constant 0 : index
    %13 = vector.load %arg2[%c0_10, %c0_11] : memref<2x32xf32, #tpu.memory_space<vmem>>, vector<2x32xf32>
    %c0_12 = arith.constant 0 : index
    %c0_13 = arith.constant 0 : index
    %14 = vector.load %arg3[%c0_12, %c0_13] : memref<32x32xf32, #tpu.memory_space<vmem>>, vector<32x32xf32>
    %cst_14 = arith.constant dense<0.000000e+00> : vector<2x32xf32>
    %15 = tpu.matmul %13, %14, %cst_14 {dimension_numbers = #tpu.dot_dimension_numbers<[1], [0], [0], [1], [0, 0, 1, 1], [], []>} : vector<2x32xf32>, vector<32x32xf32>, vector<2x32xf32> -> vector<2x32xf32>
    %c0_15 = arith.constant 0 : index
    %c0_16 = arith.constant 0 : index
    %16 = vector.load %arg4[%c0_15, %c0_16] : memref<1x32xf32, #tpu.memory_space<vmem>>, vector<1x32xf32>
    %17 = vector.broadcast %16 : vector<1x32xf32> to vector<2x32xf32>
    %18 = arith.addf %15, %17 : vector<2x32xf32>
    %19 = math.tanh %18 : vector<2x32xf32>
    %20 = vector.shape_cast %6 : vector<16x32xf32> to vector<2x8x32xf32>
    %21 = vector.shape_cast %12 : vector<16x32xf32> to vector<2x8x32xf32>
    %22 = vector.shape_cast %19 : vector<2x32xf32> to vector<2x1x32xf32>
    "tpu.trace_start"() <{level = 10 : i32, message = "bqh,bkh->bqk"}> : () -> ()
    %cst_17 = arith.constant dense<0.000000e+00> : vector<2x1x8xf32>
    %23 = tpu.matmul %22, %20, %cst_17 {dimension_numbers = #tpu.dot_dimension_numbers<[2], [2], [1], [1], [0, 0, 0, 1, 1, 1], [0], [0]>} : vector<2x1x32xf32>, vector<2x8x32xf32>, vector<2x1x8xf32> -> vector<2x1x8xf32>
    "tpu.trace_stop"() : () -> ()
    %cst_18 = arith.constant dense<0xFF800000> : vector<2x1xf32>
    %24 = vector.multi_reduction <maximumf>, %23, %cst_18 [2] : vector<2x1x8xf32> to vector<2x1xf32>
    %25 = vector.shape_cast %24 : vector<2x1xf32> to vector<2x1x1xf32>
    %26 = vector.broadcast %25 : vector<2x1x1xf32> to vector<2x1x8xf32>
    %27 = arith.subf %23, %26 : vector<2x1x8xf32>
    %28 = math.exp %27 : vector<2x1x8xf32>
    %cst_19 = arith.constant dense<0.000000e+00> : vector<2x1xf32>
    %29 = vector.multi_reduction <add>, %28, %cst_19 [2] : vector<2x1x8xf32> to vector<2x1xf32>
    %30 = vector.shape_cast %29 : vector<2x1xf32> to vector<2x1x1xf32>
    "tpu.trace_start"() <{level = 10 : i32, message = "bqk,bkh->bqh"}> : () -> ()
    %cst_20 = arith.constant dense<0.000000e+00> : vector<2x1x32xf32>
    %31 = tpu.matmul %28, %21, %cst_20 {dimension_numbers = #tpu.dot_dimension_numbers<[2], [1], [1], [2], [0, 0, 0, 1, 1, 2], [0], [0]>} : vector<2x1x8xf32>, vector<2x8x32xf32>, vector<2x1x32xf32> -> vector<2x1x32xf32>
    "tpu.trace_stop"() : () -> ()
    %32 = tpu.reciprocal %30 : vector<2x1x1xf32> -> vector<2x1x1xf32>
    %33 = vector.broadcast %32 : vector<2x1x1xf32> to vector<2x1x32xf32>
    %34 = arith.mulf %31, %33 : vector<2x1x32xf32>
    %35 = vector.shape_cast %34 : vector<2x1x32xf32> to vector<2x32xf32>
    %c0_21 = arith.constant 0 : index
    %c0_22 = arith.constant 0 : index
    %36 = vector.load %arg9[%c0_21, %c0_22] : memref<2x32xf32, #tpu.memory_space<vmem>>, vector<2x32xf32>
    tpu.vector_store %arg9[%c0_21, %c0_22], %35 {strides = array<i32>} : memref<2x32xf32, #tpu.memory_space<vmem>>, vector<2x32xf32>,
    return
  }
  func.func @transform_0(%arg0: i32) -> (i32, i32) {
    %c0_i32 = arith.constant 0 : i32
    %c0_i32_0 = arith.constant 0 : i32
    return %arg0, %c0_i32 : i32, i32
  }
  func.func @transform_1(%arg0: i32) -> (i32, i32) {
    %c0_i32 = arith.constant 0 : i32
    %c0_i32_0 = arith.constant 0 : i32
    return %arg0, %c0_i32 : i32, i32
  }
  func.func @transform_2(%arg0: i32) -> (i32, i32) {
    %c0_i32 = arith.constant 0 : i32
    %c0_i32_0 = arith.constant 0 : i32
    %c0_i32_1 = arith.constant 0 : i32
    return %c0_i32, %c0_i32_0 : i32, i32
  }
  func.func @transform_3(%arg0: i32) -> (i32, i32) {
    %c0_i32 = arith.constant 0 : i32
    %c0_i32_0 = arith.constant 0 : i32
    %c0_i32_1 = arith.constant 0 : i32
    return %c0_i32, %c0_i32_0 : i32, i32
  }
  func.func @transform_4(%arg0: i32) -> (i32, i32) {
    %c0_i32 = arith.constant 0 : i32
    %c0_i32_0 = arith.constant 0 : i32
    %c0_i32_1 = arith.constant 0 : i32
    return %c0_i32, %c0_i32_0 : i32, i32
  }
  func.func @transform_5(%arg0: i32) -> (i32, i32) {
    %c0_i32 = arith.constant 0 : i32
    %c0_i32_0 = arith.constant 0 : i32
    %c0_i32_1 = arith.constant 0 : i32
    return %c0_i32, %c0_i32_0 : i32, i32
  }
  func.func @transform_6(%arg0: i32) -> (i32, i32) {
    %c0_i32 = arith.constant 0 : i32
    %c0_i32_0 = arith.constant 0 : i32
    %c0_i32_1 = arith.constant 0 : i32
    return %c0_i32, %c0_i32_0 : i32, i32
  }
  func.func @transform_7(%arg0: i32) -> (i32, i32) {
    %c0_i32 = arith.constant 0 : i32
    %c0_i32_0 = arith.constant 0 : i32
    %c0_i32_1 = arith.constant 0 : i32
    return %c0_i32, %c0_i32_0 : i32, i32
  }
  func.func @transform_8(%arg0: i32) -> (i32, i32) {
    %c0_i32 = arith.constant 0 : i32
    %c0_i32_0 = arith.constant 0 : i32
    return %arg0, %c0_i32 : i32, i32
  }
}

</mosaic_0001>

<llo_original>
// kernel: tpu_custom_call.1
$region0: #{tpu_custom_call.1}
  #allocation0 [shape = 'u32[]', space=smem, size = 0x4, offset = 0x4, fixed_abs, tag = 'smem constant byte address 0x4 - core index']
  #allocation1 [shape = 'u32[144,128]{1,0:T(1,128)}', space=vmem, size = 0x12000, scoped, tag = 'internal scratch']
  %s0 = inlined_call_operand.hbm [shape: f32[16,32], index: 0, kind: input, shape index: {}]
  %s1 = inlined_call_operand.hbm [shape: f32[2,32], index: 1, kind: input, shape index: {}]
  %s2 = inlined_call_operand.hbm [shape: f32[32,32], index: 2, kind: input, shape index: {}]
  %s3 = inlined_call_operand.vmem [shape: f32[1,32], index: 3, kind: input, shape index: {}]
  %s4 = inlined_call_operand.hbm [shape: f32[32,32], index: 4, kind: input, shape index: {}]
  %s5 = inlined_call_operand.vmem [shape: f32[1,32], index: 5, kind: input, shape index: {}]
  %s6 = inlined_call_operand.hbm [shape: f32[32,32], index: 6, kind: input, shape index: {}]
  %s7 = inlined_call_operand.vmem [shape: f32[1,32], index: 7, kind: input, shape index: {}]
  %s8 = inlined_call_operand.hbm [shape: f32[2,32], index: 8, kind: output, shape index: {}]
  %s9 = sld [smem:[#allocation0]]
  $region62: #{tpu_custom_call.1} parent=0
    _
  %s11 = ssub.s32 1, %s9
  %s12 = scalar_select 0, %s11, %s9
  $region1: #{tpu_custom_call.1} parent=0
    #allocation2 [shape = 'u8[8192]{0}', space=vmem, size = 0x2000, scoped, tag = 'input window, operand 0, single buffered']
    #allocation3 [shape = 's32[1]{0}', space=sflag, size = 0x4, scoped, tag = 'scoped memory for tpu_custom_call.1']
    #allocation4 [shape = 's32[1]{0}', space=sflag, size = 0x4, scoped, tag = 'scoped memory for tpu_custom_call.1']
    #allocation5 [shape = 'u8[1024]{0}', space=vmem, size = 0x400, scoped, tag = 'input window, operand 1, single buffered']
    #allocation6 [shape = 's32[1]{0}', space=sflag, size = 0x4, scoped, tag = 'scoped memory for tpu_custom_call.1']
    #allocation7 [shape = 'u8[16384]{0}', space=vmem, size = 0x4000, scoped, tag = 'input window, operand 2, single buffered']
    #allocation8 [shape = 'u8[16384]{0}', space=vmem, size = 0x4000, scoped, tag = 'input window, operand 4, single buffered']
    #allocation9 [shape = 's32[1]{0}', space=sflag, size = 0x4, scoped, tag = 'scoped memory for tpu_custom_call.1']
    #allocation10 [shape = 'u8[16384]{0}', space=vmem, size = 0x4000, scoped, tag = 'input window, operand 6, single buffered']
    #allocation11 [shape = 'u8[1024]{0}', space=vmem, size = 0x400, scoped, tag = 'output window, operand 0, single buffered']
    %13 = vsyncpa [#allocation3], 0
    %14 = vsyncpa [#allocation6], 0
    %15 = vsyncpa [#allocation9], 0
    %16 = vsyncpa [#allocation4], 0
    // Predicated region
    $region2: #{tpu_custom_call.1} parent=1 // pred_check
      _
    $region3: #{tpu_custom_call.1} parent=1 // pred_check_branch
      %18 = sbr.rel (0) target = $region5
    $region4: #{tpu_custom_call.1} parent=1 // pred_region
      %s20 = ssub.s32 256, 256
      %21 = vsyncadd [#allocation3], %s20
      %s22 = sshll.u32 [#allocation2], 4
      %s23 = int_to_ptr.vmem [resolvable:$true] %s22
      %28 = dma.hbm_to_vmem [thread:$0]  %s0, 256, %s23, [#allocation3], 128, 128, 8
    $region5: #{tpu_custom_call.1} parent=1 // pred_fallthru
      _
    // Predicated region
    $region6: #{tpu_custom_call.1} parent=1 // pred_check
      _
    $region7: #{tpu_custom_call.1} parent=1 // pred_check_branch
      %30 = sbr.rel (0) target = $region9
    $region8: #{tpu_custom_call.1} parent=1 // pred_region
      %s32 = ssub.s32 32, 32
      %33 = vsyncadd [#allocation6], %s32
      %s35 = sshll.u32 [#allocation5], 4
      %s36 = int_to_ptr.vmem [resolvable:$true] %s35
      %38 = dma.hbm_to_vmem [thread:$0]  %s1, 32, %s36, [#allocation6]
    $region9: #{tpu_custom_call.1} parent=1 // pred_fallthru
      _
    // Predicated region
    $region10: #{tpu_custom_call.1} parent=1 // pred_check
      _
    $region11: #{tpu_custom_call.1} parent=1 // pred_check_branch
      %40 = sbr.rel (0) target = $region13
    $region12: #{tpu_custom_call.1} parent=1 // pred_region
      %s42 = ssub.s32 512, 512
      %43 = vsyncadd [#allocation6], %s42
      %s44 = sshll.u32 [#allocation7], 4
      %s45 = int_to_ptr.vmem [resolvable:$true] %s44
      %50 = dma.hbm_to_vmem [thread:$0]  %s2, 512, %s45, [#allocation6], 128, 128, 8
    $region13: #{tpu_custom_call.1} parent=1 // pred_fallthru
      _
    // Predicated region
    $region14: #{tpu_custom_call.1} parent=1 // pred_check
      _
    $region15: #{tpu_custom_call.1} parent=1 // pred_check_branch
      %52 = sbr.rel (0) target = $region17
    $region16: #{tpu_custom_call.1} parent=1 // pred_region
      _
    $region17: #{tpu_custom_call.1} parent=1 // pred_fallthru
      _
    // Predicated region
    $region18: #{tpu_custom_call.1} parent=1 // pred_check
      _
    $region19: #{tpu_custom_call.1} parent=1 // pred_check_branch
      %54 = sbr.rel (0) target = $region21
    $region20: #{tpu_custom_call.1} parent=1 // pred_region
      %s56 = ssub.s32 512, 512
      %57 = vsyncadd [#allocation9], %s56
      %s58 = sshll.u32 [#allocation8], 4
      %s59 = int_to_ptr.vmem [resolvable:$true] %s58
      %64 = dma.hbm_to_vmem [thread:$0]  %s4, 512, %s59, [#allocation9], 128, 128, 8
    $region21: #{tpu_custom_call.1} parent=1 // pred_fallthru
      _
    // Predicated region
    $region22: #{tpu_custom_call.1} parent=1 // pred_check
      _
    $region23: #{tpu_custom_call.1} parent=1 // pred_check_branch
      %66 = sbr.rel (0) target = $region25
    $region24: #{tpu_custom_call.1} parent=1 // pred_region
      _
    $region25: #{tpu_custom_call.1} parent=1 // pred_fallthru
      _
    // Predicated region
    $region26: #{tpu_custom_call.1} parent=1 // pred_check
      _
    $region27: #{tpu_custom_call.1} parent=1 // pred_check_branch
      %68 = sbr.rel (0) target = $region29
    $region28: #{tpu_custom_call.1} parent=1 // pred_region
      %s70 = ssub.s32 512, 512
      %71 = vsyncadd [#allocation9], %s70
      %s72 = sshll.u32 [#allocation10], 4
      %s73 = int_to_ptr.vmem [resolvable:$true] %s72
      %78 = dma.hbm_to_vmem [thread:$0]  %s6, 512, %s73, [#allocation9], 128, 128, 8
    $region29: #{tpu_custom_call.1} parent=1 // pred_fallthru
      _
    // Predicated region
    $region30: #{tpu_custom_call.1} parent=1 // pred_check
      _
    $region31: #{tpu_custom_call.1} parent=1 // pred_check_branch
      %80 = sbr.rel (0) target = $region33
    $region32: #{tpu_custom_call.1} parent=1 // pred_region
      _
    $region33: #{tpu_custom_call.1} parent=1 // pred_fallthru
      _
    // Predicated region
    $region34: #{tpu_custom_call.1} parent=1 // pred_check
      _
    $region35: #{tpu_custom_call.1} parent=1 // pred_check_branch
      %82 = sbr.rel (0) target = $region37
    $region36: #{tpu_custom_call.1} parent=1 // pred_region
      %83 = dma.done [#allocation3], 256
    $region37: #{tpu_custom_call.1} parent=1 // pred_fallthru
      _
    // Predicated region
    $region38: #{tpu_custom_call.1} parent=1 // pred_check
      _
    $region39: #{tpu_custom_call.1} parent=1 // pred_check_branch
      %85 = sbr.rel (0) target = $region41
    $region40: #{tpu_custom_call.1} parent=1 // pred_region
      %86 = dma.done [#allocation6], 32
    $region41: #{tpu_custom_call.1} parent=1 // pred_fallthru
      _
    // Predicated region
    $region42: #{tpu_custom_call.1} parent=1 // pred_check
      _
    $region43: #{tpu_custom_call.1} parent=1 // pred_check_branch
      %88 = sbr.rel (0) target = $region45
    $region44: #{tpu_custom_call.1} parent=1 // pred_region
      %89 = dma.done [#allocation6], 512
    $region45: #{tpu_custom_call.1} parent=1 // pred_fallthru
      _
    // Predicated region
    $region46: #{tpu_custom_call.1} parent=1 // pred_check
      _
    $region47: #{tpu_custom_call.1} parent=1 // pred_check_branch
      %91 = sbr.rel (0) target = $region49
    $region48: #{tpu_custom_call.1} parent=1 // pred_region
      %92 = dma.done [#allocation9], 512
    $region49: #{tpu_custom_call.1} parent=1 // pred_fallthru
      _
    // Predicated region
    $region50: #{tpu_custom_call.1} parent=1 // pred_check
      _
    $region51: #{tpu_custom_call.1} parent=1 // pred_check_branch
      %94 = sbr.rel (0) target = $region53
    $region52: #{tpu_custom_call.1} parent=1 // pred_region
      %95 = dma.done [#allocation9], 512
    $region53: #{tpu_custom_call.1} parent=1 // pred_fallthru
      _
    %v96 = vld [vmem:[#allocation2] sm:$0xff]
    %v97 = vld [vmem:[#allocation2 + $0x8] sm:$0xff]
    %v98 = vld [vmem:[#allocation8] sm:$0xff]
    %v99 = vld [vmem:[#allocation8 + $0x8] sm:$0xff]
    %v100 = vld [vmem:[#allocation8 + $0x10] sm:$0xff]
    %v101 = vld [vmem:[#allocation8 + $0x18] sm:$0xff]
    %v102 = vld [vmem:[%s5] sm:$0x1]
    %v104 = vlaneseq
    %v105 = vshrl.u32 %v104, 7
    %v106 = vsub.s32 0, %v105
    %v107 = vrot.slane %v102, %v106
    %vm109 = vcmask 261120
    %v111 = vsel %vm109, %v96, 0
    %v114 = vsel %vm109, %v97, 0
    %116 = vmatprep.subr.mxu0 0.0
    %117 = vmatpush1.msra.mxu0 0.0
    %118 = vmatprep.subr.mxu0 0.0
    %119 = vmatpush1.msra.mxu0 0.0
    %120 = vmatprep.subr.mxu0 0.0
    %121 = vmatpush1.msra.mxu0 0.0
    %122 = vmatprep.subr.mxu0 0.0
    %123 = vmatpush1.msra.mxu0 0.0
    %124 = vmatprep.subr.mxu0 0.0
    %125 = vmatpush1.msra.mxu0 0.0
    %126 = vmatprep.subr.mxu0 0.0
    %127 = vmatpush1.msra.mxu0 0.0
    %128 = vmatprep.subr.mxu0 0.0
    %129 = vmatpush1.msra.mxu0 0.0
    %130 = vmatprep.subr.mxu0 0.0
    %131 = vmatpush1.msra.mxu0 0.0
    %132 = vmatprep.subr.mxu0 0.0
    %133 = vmatpush1.msra.mxu0 0.0
    %134 = vmatprep.subr.mxu0 0.0
    %135 = vmatpush1.msra.mxu0 0.0
    %136 = vmatprep.subr.mxu0 0.0
    %137 = vmatpush1.msra.mxu0 0.0
    %138 = vmatprep.subr.mxu0 0.0
    %139 = vmatpush1.msra.mxu0 0.0
    %140 = vmatprep.subr.mxu0 0.0
    %141 = vmatpush1.msra.mxu0 %v101
    %142 = vmatprep.subr.mxu0 0.0
    %143 = vmatpush1.msra.mxu0 %v100
    %144 = vmatprep.subr.mxu0 0.0
    %145 = vmatpush1.msra.mxu0 %v99
    %146 = vmatprep.subr.mxu0 0.0
    %147 = vmatpush1.msra.mxu0 %v98
    %148 = vmatprep.subr.mxu0 0.0
    %149 = vmatpush2.msra.mxu0 0.0
    %150 = vmatprep.subr.mxu0 0.0
    %151 = vmatpush2.msra.mxu0 0.0
    %152 = vmatprep.subr.mxu0 0.0
    %153 = vmatpush2.msra.mxu0 0.0
    %154 = vmatprep.subr.mxu0 0.0
    %155 = vmatpush2.msra.mxu0 0.0
    %156 = vmatprep.subr.mxu0 0.0
    %157 = vmatpush2.msra.mxu0 0.0
    %158 = vmatprep.subr.mxu0 0.0
    %159 = vmatpush2.msra.mxu0 0.0
    %160 = vmatprep.subr.mxu0 0.0
    %161 = vmatpush2.msra.mxu0 0.0
    %162 = vmatprep.subr.mxu0 0.0
    %163 = vmatpush2.msra.mxu0 0.0
    %164 = vmatprep.subr.mxu0 0.0
    %165 = vmatpush2.msra.mxu0 0.0
    %166 = vmatprep.subr.mxu0 0.0
    %167 = vmatpush2.msra.mxu0 0.0
    %168 = vmatprep.subr.mxu0 0.0
    %169 = vmatpush2.msra.mxu0 0.0
    %170 = vmatprep.subr.mxu0 0.0
    %171 = vmatpush2.msra.mxu0 0.0
    %172 = vmatprep.subr.mxu0 0.0
    %173 = vmatpush2.msra.mxu0 0.0
    %174 = vmatprep.subr.mxu0 0.0
    %175 = vmatpush2.msra.mxu0 0.0
    %176 = vmatprep.subr.mxu0 0.0
    %177 = vmatpush2.msra.mxu0 0.0
    %178 = vmatprep.subr.mxu0 0.0
    %179 = vmatpush2.msra.mxu0 0.0
    %180 = vmatprep.mubr.f32.mxu0 0.0
    %181 = vmatmul.mubr.f32.gmra.mxu0 %v111
    %v182 = vpop.f32.mrf.mxu0
    %v183 = vadd.f32 %v107, %v182
    %v184 = vpop.f32.mrf.mxu0
    %185 = vmatprep.mubr.f32.mxu0 0.0
    %186 = vmatmul.mubr.f32.gmra.mxu0 %v114
    %v187 = vpop.f32.mrf.mxu0
    %v188 = vadd.f32 %v107, %v187
    %v189 = vpop.f32.mrf.mxu0
    %190 = vdwg.mxu0
    %v191 = vtanh.pop %v183
    %v192 = vtanh.pop %v188
    %v193 = vld [vmem:[#allocation10] sm:$0xff]
    %v194 = vld [vmem:[#allocation10 + $0x8] sm:$0xff]
    %v195 = vld [vmem:[#allocation10 + $0x10] sm:$0xff]
    %v196 = vld [vmem:[#allocation10 + $0x18] sm:$0xff]
    %v197 = vld [vmem:[%s7] sm:$0x1]
    %v199 = vlaneseq
    %v200 = vshrl.u32 %v199, 7
    %v201 = vsub.s32 0, %v200
    %v202 = vrot.slane %v197, %v201
    %204 = vmatprep.subr.mxu0 0.0
    %205 = vmatpush1.msra.mxu0 0.0
    %206 = vmatprep.subr.mxu0 0.0
    %207 = vmatpush1.msra.mxu0 0.0
    %208 = vmatprep.subr.mxu0 0.0
    %209 = vmatpush1.msra.mxu0 0.0
    %210 = vmatprep.subr.mxu0 0.0
    %211 = vmatpush1.msra.mxu0 0.0
    %212 = vmatprep.subr.mxu0 0.0
    %213 = vmatpush1.msra.mxu0 0.0
    %214 = vmatprep.subr.mxu0 0.0
    %215 = vmatpush1.msra.mxu0 0.0
    %216 = vmatprep.subr.mxu0 0.0
    %217 = vmatpush1.msra.mxu0 0.0
    %218 = vmatprep.subr.mxu0 0.0
    %219 = vmatpush1.msra.mxu0 0.0
    %220 = vmatprep.subr.mxu0 0.0
    %221 = vmatpush1.msra.mxu0 0.0
    %222 = vmatprep.subr.mxu0 0.0
    %223 = vmatpush1.msra.mxu0 0.0
    %224 = vmatprep.subr.mxu0 0.0
    %225 = vmatpush1.msra.mxu0 0.0
    %226 = vmatprep.subr.mxu0 0.0
    %227 = vmatpush1.msra.mxu0 0.0
    %228 = vmatprep.subr.mxu0 0.0
    %229 = vmatpush1.msra.mxu0 %v196
    %230 = vmatprep.subr.mxu0 0.0
    %231 = vmatpush1.msra.mxu0 %v195
    %232 = vmatprep.subr.mxu0 0.0
    %233 = vmatpush1.msra.mxu0 %v194
    %234 = vmatprep.subr.mxu0 0.0
    %235 = vmatpush1.msra.mxu0 %v193
    %236 = vmatprep.subr.mxu0 0.0
    %237 = vmatpush2.msra.mxu0 0.0
    %238 = vmatprep.subr.mxu0 0.0
    %239 = vmatpush2.msra.mxu0 0.0
    %240 = vmatprep.subr.mxu0 0.0
    %241 = vmatpush2.msra.mxu0 0.0
    %242 = vmatprep.subr.mxu0 0.0
    %243 = vmatpush2.msra.mxu0 0.0
    %244 = vmatprep.subr.mxu0 0.0
    %245 = vmatpush2.msra.mxu0 0.0
    %246 = vmatprep.subr.mxu0 0.0
    %247 = vmatpush2.msra.mxu0 0.0
    %248 = vmatprep.subr.mxu0 0.0
    %249 = vmatpush2.msra.mxu0 0.0
    %250 = vmatprep.subr.mxu0 0.0
    %251 = vmatpush2.msra.mxu0 0.0
    %252 = vmatprep.subr.mxu0 0.0
    %253 = vmatpush2.msra.mxu0 0.0
    %254 = vmatprep.subr.mxu0 0.0
    %255 = vmatpush2.msra.mxu0 0.0
    %256 = vmatprep.subr.mxu0 0.0
    %257 = vmatpush2.msra.mxu0 0.0
    %258 = vmatprep.subr.mxu0 0.0
    %259 = vmatpush2.msra.mxu0 0.0
    %260 = vmatprep.subr.mxu0 0.0
    %261 = vmatpush2.msra.mxu0 0.0
    %262 = vmatprep.subr.mxu0 0.0
    %263 = vmatpush2.msra.mxu0 0.0
    %264 = vmatprep.subr.mxu0 0.0
    %265 = vmatpush2.msra.mxu0 0.0
    %266 = vmatprep.subr.mxu0 0.0
    %267 = vmatpush2.msra.mxu0 0.0
    %268 = vmatprep.mubr.f32.mxu0 0.0
    %269 = vmatmul.mubr.f32.gmra.mxu0 %v111
    %v270 = vpop.f32.mrf.mxu0
    %v271 = vadd.f32 %v202, %v270
    %v272 = vpop.f32.mrf.mxu0
    %273 = vmatprep.mubr.f32.mxu0 0.0
    %274 = vmatmul.mubr.f32.gmra.mxu0 %v114
    %v275 = vpop.f32.mrf.mxu0
    %v276 = vadd.f32 %v202, %v275
    %v277 = vpop.f32.mrf.mxu0
    %278 = vdwg.mxu0
    %v279 = vtanh.pop %v271
    %v280 = vtanh.pop %v276
    %v281 = vld [vmem:[#allocation5] sm:$0x3]
    %v282 = vld [vmem:[#allocation7] sm:$0xff]
    %v283 = vld [vmem:[#allocation7 + $0x8] sm:$0xff]
    %v284 = vld [vmem:[#allocation7 + $0x10] sm:$0xff]
    %v285 = vld [vmem:[#allocation7 + $0x18] sm:$0xff]
    %v286 = vld [vmem:[%s3] sm:$0x1]
    %v288 = vlaneseq
    %v289 = vshrl.u32 %v288, 7
    %v290 = vsub.s32 0, %v289
    %v291 = vrot.slane %v286, %v290
    %v294 = vsel %vm109, %v281, 0
    %296 = vmatprep.subr.mxu0 0.0
    %297 = vmatpush1.msra.mxu0 0.0
    %298 = vmatprep.subr.mxu0 0.0
    %299 = vmatpush1.msra.mxu0 0.0
    %300 = vmatprep.subr.mxu0 0.0
    %301 = vmatpush1.msra.mxu0 0.0
    %302 = vmatprep.subr.mxu0 0.0
    %303 = vmatpush1.msra.mxu0 0.0
    %304 = vmatprep.subr.mxu0 0.0
    %305 = vmatpush1.msra.mxu0 0.0
    %306 = vmatprep.subr.mxu0 0.0
    %307 = vmatpush1.msra.mxu0 0.0
    %308 = vmatprep.subr.mxu0 0.0
    %309 = vmatpush1.msra.mxu0 0.0
    %310 = vmatprep.subr.mxu0 0.0
    %311 = vmatpush1.msra.mxu0 0.0
    %312 = vmatprep.subr.mxu0 0.0
    %313 = vmatpush1.msra.mxu0 0.0
    %314 = vmatprep.subr.mxu0 0.0
    %315 = vmatpush1.msra.mxu0 0.0
    %316 = vmatprep.subr.mxu0 0.0
    %317 = vmatpush1.msra.mxu0 0.0
    %318 = vmatprep.subr.mxu0 0.0
    %319 = vmatpush1.msra.mxu0 0.0
    %320 = vmatprep.subr.mxu0 0.0
    %321 = vmatpush1.msra.mxu0 %v285
    %322 = vmatprep.subr.mxu0 0.0
    %323 = vmatpush1.msra.mxu0 %v284
    %324 = vmatprep.subr.mxu0 0.0
    %325 = vmatpush1.msra.mxu0 %v283
    %326 = vmatprep.subr.mxu0 0.0
    %327 = vmatpush1.msra.mxu0 %v282
    %328 = vmatprep.subr.mxu0 0.0
    %329 = vmatpush2.msra.mxu0 0.0
    %330 = vmatprep.subr.mxu0 0.0
    %331 = vmatpush2.msra.mxu0 0.0
    %332 = vmatprep.subr.mxu0 0.0
    %333 = vmatpush2.msra.mxu0 0.0
    %334 = vmatprep.subr.mxu0 0.0
    %335 = vmatpush2.msra.mxu0 0.0
    %336 = vmatprep.subr.mxu0 0.0
    %337 = vmatpush2.msra.mxu0 0.0
    %338 = vmatprep.subr.mxu0 0.0
    %339 = vmatpush2.msra.mxu0 0.0
    %340 = vmatprep.subr.mxu0 0.0
    %341 = vmatpush2.msra.mxu0 0.0
    %342 = vmatprep.subr.mxu0 0.0
    %343 = vmatpush2.msra.mxu0 0.0
    %344 = vmatprep.subr.mxu0 0.0
    %345 = vmatpush2.msra.mxu0 0.0
    %346 = vmatprep.subr.mxu0 0.0
    %347 = vmatpush2.msra.mxu0 0.0
    %348 = vmatprep.subr.mxu0 0.0
    %349 = vmatpush2.msra.mxu0 0.0
    %350 = vmatprep.subr.mxu0 0.0
    %351 = vmatpush2.msra.mxu0 0.0
    %352 = vmatprep.subr.mxu0 0.0
    %353 = vmatpush2.msra.mxu0 0.0
    %354 = vmatprep.subr.mxu0 0.0
    %355 = vmatpush2.msra.mxu0 0.0
    %356 = vmatprep.subr.mxu0 0.0
    %357 = vmatpush2.msra.mxu0 0.0
    %358 = vmatprep.subr.mxu0 0.0
    %359 = vmatpush2.msra.mxu0 0.0
    %360 = vmatprep.mubr.f32.mxu0 0.0
    %361 = vmatmul.mubr.f32.gmra.mxu0 %v294
    %v362 = vpop.f32.mrf.mxu0
    %v363 = vadd.f32 %v291, %v362
    %v364 = vpop.f32.mrf.mxu0
    %365 = vdwg.mxu0
    %v366 = vtanh.pop %v363
    %v369 = vunpack.c.l.s4 1966171168
    %v370 = vunpack.c.0.s8 %v369
    %v371 = vlaneseq
    %v372 = vshrl.u32 %v371, 7
    %v373 = vsub.s32 %v370, %v372
    %v374 = vrot.slane %v366, %v373
    %v375 = vcombine.high %v374, %v374
    %v377 = vunpack.c.l.s4 1966171168
    %v378 = vunpack.c.0.s8 %v377
    %v379 = vlaneseq
    %v380 = vshrl.u32 %v379, 7
    %v381 = vsub.s32 %v378, %v380
    %v382 = vrot.slane %v374, %v381
    %v384 = vunpack.c.l.s4 1966171168
    %v385 = vunpack.c.0.s8 %v384
    %v386 = vlaneseq
    %v387 = vshrl.u32 %v386, 7
    %v388 = vsub.s32 %v385, %v387
    %v389 = vrot.slane %v375, %v388
    %v390 = vsel %vm109, %v382, 0
    %v393 = vsel %vm109, %v191, 0
    %395 = vmatprep.subr.mxu0 0.0
    %396 = vmatpush1.xpose.msra.mxu0 0.0
    %397 = vmatprep.subr.mxu0 0.0
    %398 = vmatpush1.xpose.msra.mxu0 0.0
    %399 = vmatprep.subr.mxu0 0.0
    %400 = vmatpush1.xpose.msra.mxu0 0.0
    %401 = vmatprep.subr.mxu0 0.0
    %402 = vmatpush1.xpose.msra.mxu0 0.0
    %403 = vmatprep.subr.mxu0 0.0
    %404 = vmatpush1.xpose.msra.mxu0 0.0
    %405 = vmatprep.subr.mxu0 0.0
    %406 = vmatpush1.xpose.msra.mxu0 0.0
    %407 = vmatprep.subr.mxu0 0.0
    %408 = vmatpush1.xpose.msra.mxu0 0.0
    %409 = vmatprep.subr.mxu0 0.0
    %410 = vmatpush1.xpose.msra.mxu0 0.0
    %411 = vmatprep.subr.mxu0 0.0
    %412 = vmatpush1.xpose.msra.mxu0 0.0
    %413 = vmatprep.subr.mxu0 0.0
    %414 = vmatpush1.xpose.msra.mxu0 0.0
    %415 = vmatprep.subr.mxu0 0.0
    %416 = vmatpush1.xpose.msra.mxu0 0.0
    %417 = vmatprep.subr.mxu0 0.0
    %418 = vmatpush1.xpose.msra.mxu0 0.0
    %419 = vmatprep.subr.mxu0 0.0
    %420 = vmatpush1.xpose.msra.mxu0 0.0
    %421 = vmatprep.subr.mxu0 0.0
    %422 = vmatpush1.xpose.msra.mxu0 0.0
    %423 = vmatprep.subr.mxu0 0.0
    %424 = vmatpush1.xpose.msra.mxu0 0.0
    %425 = vmatprep.subr.mxu0 0.0
    %426 = vmatpush1.xpose.msra.mxu0 %v393
    %427 = vmatprep.subr.mxu0 0.0
    %428 = vmatpush2.xpose.msra.mxu0 0.0
    %429 = vmatprep.subr.mxu0 0.0
    %430 = vmatpush2.xpose.msra.mxu0 0.0
    %431 = vmatprep.subr.mxu0 0.0
    %432 = vmatpush2.xpose.msra.mxu0 0.0
    %433 = vmatprep.subr.mxu0 0.0
    %434 = vmatpush2.xpose.msra.mxu0 0.0
    %435 = vmatprep.subr.mxu0 0.0
    %436 = vmatpush2.xpose.msra.mxu0 0.0
    %437 = vmatprep.subr.mxu0 0.0
    %438 = vmatpush2.xpose.msra.mxu0 0.0
    %439 = vmatprep.subr.mxu0 0.0
    %440 = vmatpush2.xpose.msra.mxu0 0.0
    %441 = vmatprep.subr.mxu0 0.0
    %442 = vmatpush2.xpose.msra.mxu0 0.0
    %443 = vmatprep.subr.mxu0 0.0
    %444 = vmatpush2.xpose.msra.mxu0 0.0
    %445 = vmatprep.subr.mxu0 0.0
    %446 = vmatpush2.xpose.msra.mxu0 0.0
    %447 = vmatprep.subr.mxu0 0.0
    %448 = vmatpush2.xpose.msra.mxu0 0.0
    %449 = vmatprep.subr.mxu0 0.0
    %450 = vmatpush2.xpose.msra.mxu0 0.0
    %451 = vmatprep.subr.mxu0 0.0
    %452 = vmatpush2.xpose.msra.mxu0 0.0
    %453 = vmatprep.subr.mxu0 0.0
    %454 = vmatpush2.xpose.msra.mxu0 0.0
    %455 = vmatprep.subr.mxu0 0.0
    %456 = vmatpush2.xpose.msra.mxu0 0.0
    %457 = vmatprep.subr.mxu0 0.0
    %458 = vmatpush2.xpose.msra.mxu0 0.0
    %459 = vmatprep.mubr.f32.mxu0 0.0
    %460 = vmatmul.mubr.f32.gmra.mxu0 %v390
    %v461 = vpop.f32.mrf.mxu0
    %v462 = vadd.f32 0.0, %v461
    %v463 = vpop.f32.mrf.mxu0
    %464 = vdwg.mxu0
    %v465 = vsel %vm109, %v389, 0
    %v468 = vsel %vm109, %v192, 0
    %470 = vmatprep.subr.mxu0 0.0
    %471 = vmatpush1.xpose.msra.mxu0 0.0
    %472 = vmatprep.subr.mxu0 0.0
    %473 = vmatpush1.xpose.msra.mxu0 0.0
    %474 = vmatprep.subr.mxu0 0.0
    %475 = vmatpush1.xpose.msra.mxu0 0.0
    %476 = vmatprep.subr.mxu0 0.0
    %477 = vmatpush1.xpose.msra.mxu0 0.0
    %478 = vmatprep.subr.mxu0 0.0
    %479 = vmatpush1.xpose.msra.mxu0 0.0
    %480 = vmatprep.subr.mxu0 0.0
    %481 = vmatpush1.xpose.msra.mxu0 0.0
    %482 = vmatprep.subr.mxu0 0.0
    %483 = vmatpush1.xpose.msra.mxu0 0.0
    %484 = vmatprep.subr.mxu0 0.0
    %485 = vmatpush1.xpose.msra.mxu0 0.0
    %486 = vmatprep.subr.mxu0 0.0
    %487 = vmatpush1.xpose.msra.mxu0 0.0
    %488 = vmatprep.subr.mxu0 0.0
    %489 = vmatpush1.xpose.msra.mxu0 0.0
    %490 = vmatprep.subr.mxu0 0.0
    %491 = vmatpush1.xpose.msra.mxu0 0.0
    %492 = vmatprep.subr.mxu0 0.0
    %493 = vmatpush1.xpose.msra.mxu0 0.0
    %494 = vmatprep.subr.mxu0 0.0
    %495 = vmatpush1.xpose.msra.mxu0 0.0
    %496 = vmatprep.subr.mxu0 0.0
    %497 = vmatpush1.xpose.msra.mxu0 0.0
    %498 = vmatprep.subr.mxu0 0.0
    %499 = vmatpush1.xpose.msra.mxu0 0.0
    %500 = vmatprep.subr.mxu0 0.0
    %501 = vmatpush1.xpose.msra.mxu0 %v468
    %502 = vmatprep.subr.mxu0 0.0
    %503 = vmatpush2.xpose.msra.mxu0 0.0
    %504 = vmatprep.subr.mxu0 0.0
    %505 = vmatpush2.xpose.msra.mxu0 0.0
    %506 = vmatprep.subr.mxu0 0.0
    %507 = vmatpush2.xpose.msra.mxu0 0.0
    %508 = vmatprep.subr.mxu0 0.0
    %509 = vmatpush2.xpose.msra.mxu0 0.0
    %510 = vmatprep.subr.mxu0 0.0
    %511 = vmatpush2.xpose.msra.mxu0 0.0
    %512 = vmatprep.subr.mxu0 0.0
    %513 = vmatpush2.xpose.msra.mxu0 0.0
    %514 = vmatprep.subr.mxu0 0.0
    %515 = vmatpush2.xpose.msra.mxu0 0.0
    %516 = vmatprep.subr.mxu0 0.0
    %517 = vmatpush2.xpose.msra.mxu0 0.0
    %518 = vmatprep.subr.mxu0 0.0
    %519 = vmatpush2.xpose.msra.mxu0 0.0
    %520 = vmatprep.subr.mxu0 0.0
    %521 = vmatpush2.xpose.msra.mxu0 0.0
    %522 = vmatprep.subr.mxu0 0.0
    %523 = vmatpush2.xpose.msra.mxu0 0.0
    %524 = vmatprep.subr.mxu0 0.0
    %525 = vmatpush2.xpose.msra.mxu0 0.0
    %526 = vmatprep.subr.mxu0 0.0
    %527 = vmatpush2.xpose.msra.mxu0 0.0
    %528 = vmatprep.subr.mxu0 0.0
    %529 = vmatpush2.xpose.msra.mxu0 0.0
    %530 = vmatprep.subr.mxu0 0.0
    %531 = vmatpush2.xpose.msra.mxu0 0.0
    %532 = vmatprep.subr.mxu0 0.0
    %533 = vmatpush2.xpose.msra.mxu0 0.0
    %534 = vmatprep.mubr.f32.mxu0 0.0
    %535 = vmatmul.mubr.f32.gmra.mxu0 %v465
    %v536 = vpop.f32.mrf.mxu0
    %v537 = vadd.f32 0.0, %v536
    %v538 = vpop.f32.mrf.mxu0
    %539 = vdwg.mxu0
    %vm540 = vcmask 57344
    %v541 = vsel %vm540, %v462, -inf
    %542 = vmax.xlane.f32.xlu0 %v541
    %v543 = vpop.xlane.xlu0 %542
    %v544 = vsel %vm540, %v537, -inf
    %545 = vmax.xlane.f32.xlu0 %v544
    %v546 = vpop.xlane.xlu0 %545
    %v547 = vsub.f32 %v462, %v543
    %v548 = vsub.f32 %v537, %v546
    %v549 = vmul.f32 %v547, 1.442695
    %v550 = vpow.pop %v549
    %v551 = vmul.f32 %v548, 1.442695
    %v552 = vpow.pop %v551
    %v553 = vsel %vm540, %v550, 0.0
    %554 = vadd.xlane.f32.xlu0 %v553
    %v555 = vpop.xlane.xlu0 %554
    %v556 = vsel %vm540, %v552, 0.0
    %557 = vadd.xlane.f32.xlu0 %v556
    %v558 = vpop.xlane.xlu0 %557
    %vm559 = vcmask 64512
    %v561 = vsel %vm559, %v550, 0
    %563 = vmatprep.subr.mxu0 0.0
    %564 = vmatpush1.msra.mxu0 0.0
    %565 = vmatprep.subr.mxu0 0.0
    %566 = vmatpush1.msra.mxu0 0.0
    %567 = vmatprep.subr.mxu0 0.0
    %568 = vmatpush1.msra.mxu0 0.0
    %569 = vmatprep.subr.mxu0 0.0
    %570 = vmatpush1.msra.mxu0 0.0
    %571 = vmatprep.subr.mxu0 0.0
    %572 = vmatpush1.msra.mxu0 0.0
    %573 = vmatprep.subr.mxu0 0.0
    %574 = vmatpush1.msra.mxu0 0.0
    %575 = vmatprep.subr.mxu0 0.0
    %576 = vmatpush1.msra.mxu0 0.0
    %577 = vmatprep.subr.mxu0 0.0
    %578 = vmatpush1.msra.mxu0 0.0
    %579 = vmatprep.subr.mxu0 0.0
    %580 = vmatpush1.msra.mxu0 0.0
    %581 = vmatprep.subr.mxu0 0.0
    %582 = vmatpush1.msra.mxu0 0.0
    %583 = vmatprep.subr.mxu0 0.0
    %584 = vmatpush1.msra.mxu0 0.0
    %585 = vmatprep.subr.mxu0 0.0
    %586 = vmatpush1.msra.mxu0 0.0
    %587 = vmatprep.subr.mxu0 0.0
    %588 = vmatpush1.msra.mxu0 0.0
    %589 = vmatprep.subr.mxu0 0.0
    %590 = vmatpush1.msra.mxu0 0.0
    %591 = vmatprep.subr.mxu0 0.0
    %592 = vmatpush1.msra.mxu0 0.0
    %593 = vmatprep.subr.mxu0 0.0
    %594 = vmatpush1.msra.mxu0 %v279
    %595 = vmatprep.subr.mxu0 0.0
    %596 = vmatpush2.msra.mxu0 0.0
    %597 = vmatprep.subr.mxu0 0.0
    %598 = vmatpush2.msra.mxu0 0.0
    %599 = vmatprep.subr.mxu0 0.0
    %600 = vmatpush2.msra.mxu0 0.0
    %601 = vmatprep.subr.mxu0 0.0
    %602 = vmatpush2.msra.mxu0 0.0
    %603 = vmatprep.subr.mxu0 0.0
    %604 = vmatpush2.msra.mxu0 0.0
    %605 = vmatprep.subr.mxu0 0.0
    %606 = vmatpush2.msra.mxu0 0.0
    %607 = vmatprep.subr.mxu0 0.0
    %608 = vmatpush2.msra.mxu0 0.0
    %609 = vmatprep.subr.mxu0 0.0
    %610 = vmatpush2.msra.mxu0 0.0
    %611 = vmatprep.subr.mxu0 0.0
    %612 = vmatpush2.msra.mxu0 0.0
    %613 = vmatprep.subr.mxu0 0.0
    %614 = vmatpush2.msra.mxu0 0.0
    %615 = vmatprep.subr.mxu0 0.0
    %616 = vmatpush2.msra.mxu0 0.0
    %617 = vmatprep.subr.mxu0 0.0
    %618 = vmatpush2.msra.mxu0 0.0
    %619 = vmatprep.subr.mxu0 0.0
    %620 = vmatpush2.msra.mxu0 0.0
    %621 = vmatprep.subr.mxu0 0.0
    %622 = vmatpush2.msra.mxu0 0.0
    %623 = vmatprep.subr.mxu0 0.0
    %624 = vmatpush2.msra.mxu0 0.0
    %625 = vmatprep.subr.mxu0 0.0
    %626 = vmatpush2.msra.mxu0 0.0
    %627 = vmatprep.mubr.f32.mxu0 0.0
    %628 = vmatmul.mubr.f32.gmra.mxu0 %v561
    %v629 = vpop.f32.mrf.mxu0
    %v630 = vadd.f32 0.0, %v629
    %v631 = vpop.f32.mrf.mxu0
    %632 = vdwg.mxu0
    %v634 = vsel %vm559, %v552, 0
    %636 = vmatprep.subr.mxu0 0.0
    %637 = vmatpush1.msra.mxu0 0.0
    %638 = vmatprep.subr.mxu0 0.0
    %639 = vmatpush1.msra.mxu0 0.0
    %640 = vmatprep.subr.mxu0 0.0
    %641 = vmatpush1.msra.mxu0 0.0
    %642 = vmatprep.subr.mxu0 0.0
    %643 = vmatpush1.msra.mxu0 0.0
    %644 = vmatprep.subr.mxu0 0.0
    %645 = vmatpush1.msra.mxu0 0.0
    %646 = vmatprep.subr.mxu0 0.0
    %647 = vmatpush1.msra.mxu0 0.0
    %648 = vmatprep.subr.mxu0 0.0
    %649 = vmatpush1.msra.mxu0 0.0
    %650 = vmatprep.subr.mxu0 0.0
    %651 = vmatpush1.msra.mxu0 0.0
    %652 = vmatprep.subr.mxu0 0.0
    %653 = vmatpush1.msra.mxu0 0.0
    %654 = vmatprep.subr.mxu0 0.0
    %655 = vmatpush1.msra.mxu0 0.0
    %656 = vmatprep.subr.mxu0 0.0
    %657 = vmatpush1.msra.mxu0 0.0
    %658 = vmatprep.subr.mxu0 0.0
    %659 = vmatpush1.msra.mxu0 0.0
    %660 = vmatprep.subr.mxu0 0.0
    %661 = vmatpush1.msra.mxu0 0.0
    %662 = vmatprep.subr.mxu0 0.0
    %663 = vmatpush1.msra.mxu0 0.0
    %664 = vmatprep.subr.mxu0 0.0
    %665 = vmatpush1.msra.mxu0 0.0
    %666 = vmatprep.subr.mxu0 0.0
    %667 = vmatpush1.msra.mxu0 %v280
    %668 = vmatprep.subr.mxu0 0.0
    %669 = vmatpush2.msra.mxu0 0.0
    %670 = vmatprep.subr.mxu0 0.0
    %671 = vmatpush2.msra.mxu0 0.0
    %672 = vmatprep.subr.mxu0 0.0
    %673 = vmatpush2.msra.mxu0 0.0
    %674 = vmatprep.subr.mxu0 0.0
    %675 = vmatpush2.msra.mxu0 0.0
    %676 = vmatprep.subr.mxu0 0.0
    %677 = vmatpush2.msra.mxu0 0.0
    %678 = vmatprep.subr.mxu0 0.0
    %679 = vmatpush2.msra.mxu0 0.0
    %680 = vmatprep.subr.mxu0 0.0
    %681 = vmatpush2.msra.mxu0 0.0
    %682 = vmatprep.subr.mxu0 0.0
    %683 = vmatpush2.msra.mxu0 0.0
    %684 = vmatprep.subr.mxu0 0.0
    %685 = vmatpush2.msra.mxu0 0.0
    %686 = vmatprep.subr.mxu0 0.0
    %687 = vmatpush2.msra.mxu0 0.0
    %688 = vmatprep.subr.mxu0 0.0
    %689 = vmatpush2.msra.mxu0 0.0
    %690 = vmatprep.subr.mxu0 0.0
    %691 = vmatpush2.msra.mxu0 0.0
    %692 = vmatprep.subr.mxu0 0.0
    %693 = vmatpush2.msra.mxu0 0.0
    %694 = vmatprep.subr.mxu0 0.0
    %695 = vmatpush2.msra.mxu0 0.0
    %696 = vmatprep.subr.mxu0 0.0
    %697 = vmatpush2.msra.mxu0 0.0
    %698 = vmatprep.subr.mxu0 0.0
    %699 = vmatpush2.msra.mxu0 0.0
    %700 = vmatprep.mubr.f32.mxu0 0.0
    %701 = vmatmul.mubr.f32.gmra.mxu0 %v634
    %v702 = vpop.f32.mrf.mxu0
    %v703 = vadd.f32 0.0, %v702
    %v704 = vpop.f32.mrf.mxu0
    %705 = vdwg.mxu0
    %v706 = vrcp.pop %v555
    %v707 = vrcp.pop %v558
    %v708 = vmul.f32 %v630, %v706
    %v709 = vmul.f32 %v703, %v707
    %v712 = vrot.slane %v709, 7
    %vm713 = vcmask 1041409
    %v714 = vsel %vm713, %v712, %v708
    %vm716 = vcmask 254976
    %717 = vst.msk [vmem:[#allocation11] sm:$0x3] %vm716, %v714
    // Predicated region
    $region54: #{tpu_custom_call.1} parent=1 // pred_check
      _
    $region55: #{tpu_custom_call.1} parent=1 // pred_check_branch
      %719 = sbr.rel (0) target = $region57
    $region56: #{tpu_custom_call.1} parent=1 // pred_region
      %s721 = ssub.s32 32, 32
      %722 = vsyncadd [#allocation4], %s721
      %s724 = sshll.u32 [#allocation11], 4
      %s725 = int_to_ptr.vmem [resolvable:$true] %s724
      %727 = dma.vmem_to_hbm [thread:$0]  %s725, 32, %s8, [#allocation4]
    $region57: #{tpu_custom_call.1} parent=1 // pred_fallthru
      _
    // Predicated region
    $region58: #{tpu_custom_call.1} parent=1 // pred_check
      _
    $region59: #{tpu_custom_call.1} parent=1 // pred_check_branch
      %729 = sbr.rel (0) target = $region61
    $region60: #{tpu_custom_call.1} parent=1 // pred_region
      %730 = dma.done [#allocation4], 32
    $region61: #{tpu_custom_call.1} parent=1 // pred_fallthru
      _
    %731 = vsyncpa [#allocation3], 1
    %732 = vsyncpa [#allocation6], 1
    %733 = vsyncpa [#allocation9], 1
    %734 = vsyncpa [#allocation4], 1

</llo_original>
